<compile_context>
chip_gen: v5e
topology: v5e:2x2
jax: 0.10.0
libtpu: 0.0.40
codegen_flags: <defaults>
</compile_context>

<pallas_src>
import jax
import jax.numpy as jnp
import numpy as np
from jax.experimental import pallas as pl
from jax.experimental.pallas import tpu as pltpu


def bc_mlp_kernel(x_ref, w1_ref, b1_ref, w2_ref, b2_ref, w3_ref, b3_ref, o_ref):
    # x tile and weights arrive as bf16; accumulate every matmul in f32 on the MXU,
    # do bias-add / ReLU in f32 on the VPU, and re-narrow to bf16 between layers.
    x = x_ref[...]                                                        # bf16 [tile_b, INP]

    h1 = jnp.dot(x, w1_ref[...], preferred_element_type=jnp.float32) + b1_ref[...]
    h1 = jnp.maximum(h1, 0.0).astype(jnp.bfloat16)                        # ReLU -> bf16 for next MXU

    h2 = jnp.dot(h1, w2_ref[...], preferred_element_type=jnp.float32) + b2_ref[...]
    h2 = jnp.maximum(h2, 0.0).astype(jnp.bfloat16)

    out = jnp.dot(h2, w3_ref[...], preferred_element_type=jnp.float32) + b3_ref[...]
    o_ref[...] = out.astype(o_ref.dtype)                                  # lane-dense [tile_b, OUTP]


def _round_up(n, m):
    return ((n + m - 1) // m) * m


def bc_model_forward(x, params, *, tile_b=512):
    """x: [B, input_size] float32. params: w1,b1,w2,b2,w3,b3 with w_i shaped [in, out]."""
    w1, b1 = params["w1"], params["b1"]
    w2, b2 = params["w2"], params["b2"]
    w3, b3 = params["w3"], params["b3"]

    B, in_size = x.shape
    h1 = w1.shape[1]
    h2 = w2.shape[1]
    out_size = w3.shape[1]

    # Lane-dense padded widths (multiples of 128) and a sublane-aligned batch tile.
    INP = _round_up(in_size, 128)
    H1P = _round_up(h1, 128)
    H2P = _round_up(h2, 128)
    OUTP = _round_up(out_size, 128)

    tile_b = max(8, min(tile_b, _round_up(B, 8)))
    tile_b = _round_up(tile_b, 8)
    BP = _round_up(B, tile_b)

    # Zero-pad operands. Padded input columns hit zero weight rows, padded hidden columns
    # produce ReLU(0) = 0, padded output columns stay exactly 0 and are sliced off below,
    # so the padding is exactly inert.
    xp = jnp.zeros((BP, INP), jnp.bfloat16).at[:B, :in_size].set(x.astype(jnp.bfloat16))
    w1p = jnp.zeros((INP, H1P), jnp.bfloat16).at[:in_size, :h1].set(w1.astype(jnp.bfloat16))
    b1p = jnp.zeros((1, H1P), jnp.float32).at[:, :h1].set(b1.astype(jnp.float32))
    w2p = jnp.zeros((H1P, H2P), jnp.bfloat16).at[:h1, :h2].set(w2.astype(jnp.bfloat16))
    b2p = jnp.zeros((1, H2P), jnp.float32).at[:, :h2].set(b2.astype(jnp.float32))
    w3p = jnp.zeros((H2P, OUTP), jnp.bfloat16).at[:h2, :out_size].set(w3.astype(jnp.bfloat16))
    b3p = jnp.zeros((1, OUTP), jnp.float32).at[:, :out_size].set(b3.astype(jnp.float32))

    grid = (BP // tile_b,)

    # Weights/biases: one full block, constant index_map -> DMA'd once, VMEM-resident.
    full_block = lambda a: pl.BlockSpec(a.shape, lambda i: (0,) * a.ndim)

    flops = 2 * BP * (INP * H1P + H1P * H2P + H2P * OUTP)
    bytes_accessed = (
        xp.size * 2
        + (w1p.size + w2p.size + w3p.size) * 2
        + (b1p.size + b2p.size + b3p.size) * 4
        + BP * OUTP * 4
    )

    out_padded = pl.pallas_call(
        bc_mlp_kernel,
        out_shape=jax.ShapeDtypeStruct((BP, OUTP), jnp.float32),
        grid=grid,
        in_specs=[
            pl.BlockSpec((tile_b, INP), lambda i: (i, 0)),        # x: row-tiled, double-buffered
            full_block(w1p), full_block(b1p),
            full_block(w2p), full_block(b2p),
            full_block(w3p), full_block(b3p),
        ],
        out_specs=pl.BlockSpec((tile_b, OUTP), lambda i: (i, 0)),
        compiler_params=pltpu.CompilerParams(
            dimension_semantics=("parallel",),                    # megacore sharding on v7x
        ),
        cost_estimate=pl.CostEstimate(
            flops=flops, transcendentals=0, bytes_accessed=bytes_accessed
        ),
    )(xp, w1p, b1p, w2p, b2p, w3p, b3p)

    return out_padded[:B, :out_size]


def init_params(key, input_size, h1, h2, output_size):
    """PyTorch nn.Linear default init (U[-1/sqrt(fan_in), 1/sqrt(fan_in)]).
    Weights stored as [in, out] (transpose of PyTorch's [out, in]); biases as [1, out]."""
    keys = jax.random.split(key, 6)

    def linear(kw, kb, fan_in, fan_out):
        bound = 1.0 / np.sqrt(fan_in)
        w = jax.random.uniform(kw, (fan_in, fan_out), jnp.float32, -bound, bound)
        b = jax.random.uniform(kb, (1, fan_out), jnp.float32, -bound, bound)
        return w, b

    w1, b1 = linear(keys[0], keys[1], input_size, h1)
    w2, b2 = linear(keys[2], keys[3], h1, h2)
    w3, b3 = linear(keys[4], keys[5], h2, output_size)
    return dict(w1=w1, b1=b1, w2=w2, b2=b2, w3=w3, b3=b3)


def bc_model_reference(x, p):
    h1 = jnp.maximum(x @ p["w1"] + p["b1"], 0.0)
    h2 = jnp.maximum(h1 @ p["w2"] + p["b2"], 0.0)
    return h2 @ p["w3"] + p["b3"]


if __name__ == "__main__":
    # Small, representative BC shapes: state dim 32 -> 64 -> 64 -> action dim 16.
    batch, input_size, hidden1, hidden2, output_size = 20, 32, 64, 64, 16

    key = jax.random.PRNGKey(0)
    kx, kp = jax.random.split(key)
    x = jax.random.normal(kx, (batch, input_size), jnp.float32)
    params = init_params(kp, input_size, hidden1, hidden2, output_size)

    ref = bc_model_reference(x, params)

    # Default path: single large batch tile (tile_b clamped to the padded batch).
    out = bc_model_forward(x, params)
    jax.block_until_ready(out)
    # bf16 MXU operands with f32 accumulation -> loosened tolerance vs. f32 reference.
    np.testing.assert_allclose(np.asarray(out), np.asarray(ref), rtol=2e-2, atol=2e-2)

    # Multi-step grid path: small tile exercises batch padding + software pipelining.
    out_tiled = bc_model_forward(x, params, tile_b=8)
    jax.block_until_ready(out_tiled)
    np.testing.assert_allclose(np.asarray(out_tiled), np.asarray(ref), rtol=2e-2, atol=2e-2)

    print("KERNEL_OK")
</pallas_src>

<mosaic_0001>
module attributes {stable_mosaic.version = 11 : i64} {
  func.func @bc_mlp_kernel(%arg0: i32, %arg1: memref<24x128xbf16, #tpu.memory_space<vmem>>, %arg2: memref<128x128xbf16, #tpu.memory_space<vmem>>, %arg3: memref<1x128xf32, #tpu.memory_space<vmem>>, %arg4: memref<128x128xbf16, #tpu.memory_space<vmem>>, %arg5: memref<1x128xf32, #tpu.memory_space<vmem>>, %arg6: memref<128x128xbf16, #tpu.memory_space<vmem>>, %arg7: memref<1x128xf32, #tpu.memory_space<vmem>>, %arg8: memref<24x128xf32, #tpu.memory_space<vmem>>) attributes {dimension_semantics = [#tpu.dimension_semantics<parallel>], iteration_bounds = array<i64: 1>, scalar_prefetch = 0 : i64, scratch_operands = 0 : i64, tpu.core_type = #tpu.core_type<tc>, window_params = [{transform_indices = @transform_0, window_bounds = array<i64: 24, 128>}, {pipeline_mode = #tpu.pipeline_mode<synchronous>, transform_indices = @transform_1, window_bounds = array<i64: 128, 128>}, {pipeline_mode = #tpu.pipeline_mode<synchronous>, transform_indices = @transform_2, window_bounds = array<i64: 1, 128>}, {pipeline_mode = #tpu.pipeline_mode<synchronous>, transform_indices = @transform_3, window_bounds = array<i64: 128, 128>}, {pipeline_mode = #tpu.pipeline_mode<synchronous>, transform_indices = @transform_4, window_bounds = array<i64: 1, 128>}, {pipeline_mode = #tpu.pipeline_mode<synchronous>, transform_indices = @transform_5, window_bounds = array<i64: 128, 128>}, {pipeline_mode = #tpu.pipeline_mode<synchronous>, transform_indices = @transform_6, window_bounds = array<i64: 1, 128>}, {transform_indices = @transform_7, window_bounds = array<i64: 24, 128>}]} {
    %c0 = arith.constant 0 : index
    %c0_0 = arith.constant 0 : index
    %0 = vector.load %arg1[%c0, %c0_0] : memref<24x128xbf16, #tpu.memory_space<vmem>>, vector<24x128xbf16>
    %c0_1 = arith.constant 0 : index
    %c0_2 = arith.constant 0 : index
    %1 = vector.load %arg2[%c0_1, %c0_2] : memref<128x128xbf16, #tpu.memory_space<vmem>>, vector<128x128xbf16>
    %cst = arith.constant dense<0.000000e+00> : vector<24x128xf32>
    %2 = tpu.matmul %0, %1, %cst {dimension_numbers = #tpu.dot_dimension_numbers<[1], [0], [0], [1], [0, 0, 1, 1], [], []>} : vector<24x128xbf16>, vector<128x128xbf16>, vector<24x128xf32> -> vector<24x128xf32>
    %c0_3 = arith.constant 0 : index
    %c0_4 = arith.constant 0 : index
    %3 = vector.load %arg3[%c0_3, %c0_4] : memref<1x128xf32, #tpu.memory_space<vmem>>, vector<1x128xf32>
    %4 = vector.broadcast %3 : vector<1x128xf32> to vector<24x128xf32>
    %5 = arith.addf %2, %4 : vector<24x128xf32>
    %cst_5 = arith.constant 0.000000e+00 : f32
    %6 = vector.broadcast %cst_5 : f32 to vector<24x128xf32>
    %7 = arith.maximumf %5, %6 : vector<24x128xf32>
    %8 = arith.truncf %7 : vector<24x128xf32> to vector<24x128xbf16>
    %c0_6 = arith.constant 0 : index
    %c0_7 = arith.constant 0 : index
    %9 = vector.load %arg4[%c0_6, %c0_7] : memref<128x128xbf16, #tpu.memory_space<vmem>>, vector<128x128xbf16>
    %cst_8 = arith.constant dense<0.000000e+00> : vector<24x128xf32>
    %10 = tpu.matmul %8, %9, %cst_8 {dimension_numbers = #tpu.dot_dimension_numbers<[1], [0], [0], [1], [0, 0, 1, 1], [], []>} : vector<24x128xbf16>, vector<128x128xbf16>, vector<24x128xf32> -> vector<24x128xf32>
    %c0_9 = arith.constant 0 : index
    %c0_10 = arith.constant 0 : index
    %11 = vector.load %arg5[%c0_9, %c0_10] : memref<1x128xf32, #tpu.memory_space<vmem>>, vector<1x128xf32>
    %12 = vector.broadcast %11 : vector<1x128xf32> to vector<24x128xf32>
    %13 = arith.addf %10, %12 : vector<24x128xf32>
    %cst_11 = arith.constant 0.000000e+00 : f32
    %14 = vector.broadcast %cst_11 : f32 to vector<24x128xf32>
    %15 = arith.maximumf %13, %14 : vector<24x128xf32>
    %16 = arith.truncf %15 : vector<24x128xf32> to vector<24x128xbf16>
    %c0_12 = arith.constant 0 : index
    %c0_13 = arith.constant 0 : index
    %17 = vector.load %arg6[%c0_12, %c0_13] : memref<128x128xbf16, #tpu.memory_space<vmem>>, vector<128x128xbf16>
    %cst_14 = arith.constant dense<0.000000e+00> : vector<24x128xf32>
    %18 = tpu.matmul %16, %17, %cst_14 {dimension_numbers = #tpu.dot_dimension_numbers<[1], [0], [0], [1], [0, 0, 1, 1], [], []>} : vector<24x128xbf16>, vector<128x128xbf16>, vector<24x128xf32> -> vector<24x128xf32>
    %c0_15 = arith.constant 0 : index
    %c0_16 = arith.constant 0 : index
    %19 = vector.load %arg7[%c0_15, %c0_16] : memref<1x128xf32, #tpu.memory_space<vmem>>, vector<1x128xf32>
    %20 = vector.broadcast %19 : vector<1x128xf32> to vector<24x128xf32>
    %21 = arith.addf %18, %20 : vector<24x128xf32>
    %c0_17 = arith.constant 0 : index
    %c0_18 = arith.constant 0 : index
    %22 = vector.load %arg8[%c0_17, %c0_18] : memref<24x128xf32, #tpu.memory_space<vmem>>, vector<24x128xf32>
    tpu.vector_store %arg8[%c0_17, %c0_18], %21 {strides = array<i32>} : memref<24x128xf32, #tpu.memory_space<vmem>>, vector<24x128xf32>,
    return
  }
  func.func @transform_0(%arg0: i32) -> (i32, i32) {
    %c0_i32 = arith.constant 0 : i32
    %c0_i32_0 = arith.constant 0 : i32
    return %arg0, %c0_i32 : i32, i32
  }
  func.func @transform_1(%arg0: i32) -> (i32, i32) {
    %c0_i32 = arith.constant 0 : i32
    %c0_i32_0 = arith.constant 0 : i32
    %c0_i32_1 = arith.constant 0 : i32
    return %c0_i32, %c0_i32_0 : i32, i32
  }
  func.func @transform_2(%arg0: i32) -> (i32, i32) {
    %c0_i32 = arith.constant 0 : i32
    %c0_i32_0 = arith.constant 0 : i32
    %c0_i32_1 = arith.constant 0 : i32
    return %c0_i32, %c0_i32_0 : i32, i32
  }
  func.func @transform_3(%arg0: i32) -> (i32, i32) {
    %c0_i32 = arith.constant 0 : i32
    %c0_i32_0 = arith.constant 0 : i32
    %c0_i32_1 = arith.constant 0 : i32
    return %c0_i32, %c0_i32_0 : i32, i32
  }
  func.func @transform_4(%arg0: i32) -> (i32, i32) {
    %c0_i32 = arith.constant 0 : i32
    %c0_i32_0 = arith.constant 0 : i32
    %c0_i32_1 = arith.constant 0 : i32
    return %c0_i32, %c0_i32_0 : i32, i32
  }
  func.func @transform_5(%arg0: i32) -> (i32, i32) {
    %c0_i32 = arith.constant 0 : i32
    %c0_i32_0 = arith.constant 0 : i32
    %c0_i32_1 = arith.constant 0 : i32
    return %c0_i32, %c0_i32_0 : i32, i32
  }
  func.func @transform_6(%arg0: i32) -> (i32, i32) {
    %c0_i32 = arith.constant 0 : i32
    %c0_i32_0 = arith.constant 0 : i32
    %c0_i32_1 = arith.constant 0 : i32
    return %c0_i32, %c0_i32_0 : i32, i32
  }
  func.func @transform_7(%arg0: i32) -> (i32, i32) {
    %c0_i32 = arith.constant 0 : i32
    %c0_i32_0 = arith.constant 0 : i32
    return %arg0, %c0_i32 : i32, i32
  }
}

</mosaic_0001>

<llo_original>
// kernel: tpu_custom_call.1
$region0: #{tpu_custom_call.1}
  #allocation0 [shape = 'u32[]', space=smem, size = 0x4, offset = 0x4, fixed_abs, tag = 'smem constant byte address 0x4 - core index']
  #allocation1 [shape = 'u32[72,128]{1,0:T(1,128)}', space=vmem, size = 0x9000, scoped, tag = 'internal scratch']
  %s0 = inlined_call_operand.hbm [shape: bf16[24,128], index: 0, kind: input, shape index: {}]
  %s1 = inlined_call_operand.hbm [shape: bf16[128,128], index: 1, kind: input, shape index: {}]
  %s2 = inlined_call_operand.vmem [shape: f32[1,128], index: 2, kind: input, shape index: {}]
  %s3 = inlined_call_operand.hbm [shape: bf16[128,128], index: 3, kind: input, shape index: {}]
  %s4 = inlined_call_operand.vmem [shape: f32[1,128], index: 4, kind: input, shape index: {}]
  %s5 = inlined_call_operand.hbm [shape: bf16[128,128], index: 5, kind: input, shape index: {}]
  %s6 = inlined_call_operand.vmem [shape: f32[1,128], index: 6, kind: input, shape index: {}]
  %s7 = inlined_call_operand.hbm [shape: f32[24,128], index: 7, kind: output, shape index: {}]
  %s8 = sld [smem:[#allocation0]]
  $region54: #{tpu_custom_call.1} parent=0
    _
  %s10 = ssub.s32 1, %s8
  %s11 = scalar_select 0, %s10, %s8
  $region1: #{tpu_custom_call.1} parent=0
    #allocation2 [shape = 'u8[6144]{0}', space=vmem, size = 0x1800, scoped, tag = 'input window, operand 0, single buffered']
    #allocation3 [shape = 's32[1]{0}', space=sflag, size = 0x4, scoped, tag = 'scoped memory for tpu_custom_call.1']
    #allocation4 [shape = 's32[1]{0}', space=sflag, size = 0x4, scoped, tag = 'scoped memory for tpu_custom_call.1']
    #allocation5 [shape = 'u8[32768]{0}', space=vmem, size = 0x8000, scoped, tag = 'input window, operand 1, single buffered']
    #allocation6 [shape = 's32[1]{0}', space=sflag, size = 0x4, scoped, tag = 'scoped memory for tpu_custom_call.1']
    #allocation7 [shape = 'u8[32768]{0}', space=vmem, size = 0x8000, scoped, tag = 'input window, operand 3, single buffered']
    #allocation8 [shape = 'u8[32768]{0}', space=vmem, size = 0x8000, scoped, tag = 'input window, operand 5, single buffered']
    #allocation9 [shape = 's32[1]{0}', space=sflag, size = 0x4, scoped, tag = 'scoped memory for tpu_custom_call.1']
    #allocation10 [shape = 'u8[12288]{0}', space=vmem, size = 0x3000, scoped, tag = 'output window, operand 0, single buffered']
    %12 = vsyncpa [#allocation3], 0
    %13 = vsyncpa [#allocation6], 0
    %14 = vsyncpa [#allocation9], 0
    %15 = vsyncpa [#allocation4], 0
    // Predicated region
    $region2: #{tpu_custom_call.1} parent=1 // pred_check
      _
    $region3: #{tpu_custom_call.1} parent=1 // pred_check_branch
      %17 = sbr.rel (0) target = $region5
    $region4: #{tpu_custom_call.1} parent=1 // pred_region
      %19 = vsyncadd [#allocation3], 0
      %s20 = sshll.u32 %s0, 4
      %s21 = int_to_ptr.hbm [resolvable:$true] %s20
      %s22 = sshll.u32 [#allocation2], 4
      %s23 = int_to_ptr.vmem [resolvable:$true] %s22
      %28 = dma.hbm_to_vmem [thread:$0]  %s21, 192, %s23, [#allocation3], 64, 64, 4
    $region5: #{tpu_custom_call.1} parent=1 // pred_fallthru
      _
    // Predicated region
    $region6: #{tpu_custom_call.1} parent=1 // pred_check
      _
    $region7: #{tpu_custom_call.1} parent=1 // pred_check_branch
      %30 = sbr.rel (0) target = $region9
    $region8: #{tpu_custom_call.1} parent=1 // pred_region
      %32 = vsyncadd [#allocation6], 0
      %s33 = sshll.u32 %s1, 4
      %s34 = int_to_ptr.hbm [resolvable:$true] %s33
      %s35 = sshll.u32 [#allocation5], 4
      %s36 = int_to_ptr.vmem [resolvable:$true] %s35
      %41 = dma.hbm_to_vmem [thread:$0]  %s34, 1024, %s36, [#allocation6], 64, 64, 4
    $region9: #{tpu_custom_call.1} parent=1 // pred_fallthru
      _
    // Predicated region
    $region10: #{tpu_custom_call.1} parent=1 // pred_check
      _
    $region11: #{tpu_custom_call.1} parent=1 // pred_check_branch
      %43 = sbr.rel (0) target = $region13
    $region12: #{tpu_custom_call.1} parent=1 // pred_region
      _
    $region13: #{tpu_custom_call.1} parent=1 // pred_fallthru
      _
    // Predicated region
    $region14: #{tpu_custom_call.1} parent=1 // pred_check
      _
    $region15: #{tpu_custom_call.1} parent=1 // pred_check_branch
      %45 = sbr.rel (0) target = $region17
    $region16: #{tpu_custom_call.1} parent=1 // pred_region
      %47 = vsyncadd [#allocation6], 0
      %s48 = sshll.u32 %s3, 4
      %s49 = int_to_ptr.hbm [resolvable:$true] %s48
      %s50 = sshll.u32 [#allocation7], 4
      %s51 = int_to_ptr.vmem [resolvable:$true] %s50
      %56 = dma.hbm_to_vmem [thread:$0]  %s49, 1024, %s51, [#allocation6], 64, 64, 4
    $region17: #{tpu_custom_call.1} parent=1 // pred_fallthru
      _
    // Predicated region
    $region18: #{tpu_custom_call.1} parent=1 // pred_check
      _
    $region19: #{tpu_custom_call.1} parent=1 // pred_check_branch
      %58 = sbr.rel (0) target = $region21
    $region20: #{tpu_custom_call.1} parent=1 // pred_region
      _
    $region21: #{tpu_custom_call.1} parent=1 // pred_fallthru
      _
    // Predicated region
    $region22: #{tpu_custom_call.1} parent=1 // pred_check
      _
    $region23: #{tpu_custom_call.1} parent=1 // pred_check_branch
      %60 = sbr.rel (0) target = $region25
    $region24: #{tpu_custom_call.1} parent=1 // pred_region
      %62 = vsyncadd [#allocation9], 0
      %s63 = sshll.u32 %s5, 4
      %s64 = int_to_ptr.hbm [resolvable:$true] %s63
      %s65 = sshll.u32 [#allocation8], 4
      %s66 = int_to_ptr.vmem [resolvable:$true] %s65
      %71 = dma.hbm_to_vmem [thread:$0]  %s64, 1024, %s66, [#allocation9], 64, 64, 4
    $region25: #{tpu_custom_call.1} parent=1 // pred_fallthru
      _
    // Predicated region
    $region26: #{tpu_custom_call.1} parent=1 // pred_check
      _
    $region27: #{tpu_custom_call.1} parent=1 // pred_check_branch
      %73 = sbr.rel (0) target = $region29
    $region28: #{tpu_custom_call.1} parent=1 // pred_region
      _
    $region29: #{tpu_custom_call.1} parent=1 // pred_fallthru
      _
    // Predicated region
    $region30: #{tpu_custom_call.1} parent=1 // pred_check
      _
    $region31: #{tpu_custom_call.1} parent=1 // pred_check_branch
      %75 = sbr.rel (0) target = $region33
    $region32: #{tpu_custom_call.1} parent=1 // pred_region
      %77 = dma.done [#allocation3], 192
    $region33: #{tpu_custom_call.1} parent=1 // pred_fallthru
      _
    // Predicated region
    $region34: #{tpu_custom_call.1} parent=1 // pred_check
      _
    $region35: #{tpu_custom_call.1} parent=1 // pred_check_branch
      %79 = sbr.rel (0) target = $region37
    $region36: #{tpu_custom_call.1} parent=1 // pred_region
      %81 = dma.done [#allocation6], 1024
    $region37: #{tpu_custom_call.1} parent=1 // pred_fallthru
      _
    // Predicated region
    $region38: #{tpu_custom_call.1} parent=1 // pred_check
      _
    $region39: #{tpu_custom_call.1} parent=1 // pred_check_branch
      %83 = sbr.rel (0) target = $region41
    $region40: #{tpu_custom_call.1} parent=1 // pred_region
      %85 = dma.done [#allocation6], 1024
    $region41: #{tpu_custom_call.1} parent=1 // pred_fallthru
      _
    // Predicated region
    $region42: #{tpu_custom_call.1} parent=1 // pred_check
      _
    $region43: #{tpu_custom_call.1} parent=1 // pred_check_branch
      %87 = sbr.rel (0) target = $region45
    $region44: #{tpu_custom_call.1} parent=1 // pred_region
      %89 = dma.done [#allocation9], 1024
    $region45: #{tpu_custom_call.1} parent=1 // pred_fallthru
      _
    %v90 = vld [vmem:[#allocation2] sm:$0xf]
    %v91 = vld [vmem:[#allocation2 + $0x4] sm:$0xf]
    %v92 = vld [vmem:[#allocation2 + $0x8] sm:$0xf]
    %v93 = vld [vmem:[#allocation5] sm:$0xf]
    %v94 = vld [vmem:[#allocation5 + $0x4] sm:$0xf]
    %v95 = vld [vmem:[#allocation5 + $0x8] sm:$0xf]
    %v96 = vld [vmem:[#allocation5 + $0xc] sm:$0xf]
    %v97 = vld [vmem:[#allocation5 + $0x10] sm:$0xf]
    %v98 = vld [vmem:[#allocation5 + $0x14] sm:$0xf]
    %v99 = vld [vmem:[#allocation5 + $0x18] sm:$0xf]
    %v100 = vld [vmem:[#allocation5 + $0x1c] sm:$0xf]
    %v101 = vld [vmem:[#allocation5 + $0x20] sm:$0xf]
    %v102 = vld [vmem:[#allocation5 + $0x24] sm:$0xf]
    %v103 = vld [vmem:[#allocation5 + $0x28] sm:$0xf]
    %v104 = vld [vmem:[#allocation5 + $0x2c] sm:$0xf]
    %v105 = vld [vmem:[#allocation5 + $0x30] sm:$0xf]
    %v106 = vld [vmem:[#allocation5 + $0x34] sm:$0xf]
    %v107 = vld [vmem:[#allocation5 + $0x38] sm:$0xf]
    %v108 = vld [vmem:[#allocation5 + $0x3c] sm:$0xf]
    %v109 = vld [vmem:[%s2] sm:$0x1]
    %v111 = vperm.slane %v109, 0
    %v116 = vunpack.c.l.b16 %v90
    %v117 = vunpack.c.l.b16 %v91
    %v118 = vunpack.c.l.b16 %v92
    %v119 = vpack.c.b16 %v117, %v116
    %v120 = vpack.c.b16 %v118, %v118
    %v139 = vunpack.c.l.b16 %v93
    %v140 = vunpack.c.l.b16 %v94
    %v141 = vunpack.c.l.b16 %v95
    %v142 = vunpack.c.l.b16 %v96
    %v143 = vunpack.c.l.b16 %v97
    %v144 = vunpack.c.l.b16 %v98
    %v145 = vunpack.c.l.b16 %v99
    %v146 = vunpack.c.l.b16 %v100
    %v147 = vunpack.c.l.b16 %v101
    %v148 = vunpack.c.l.b16 %v102
    %v149 = vunpack.c.l.b16 %v103
    %v150 = vunpack.c.l.b16 %v104
    %v151 = vunpack.c.l.b16 %v105
    %v152 = vunpack.c.l.b16 %v106
    %v153 = vunpack.c.l.b16 %v107
    %v154 = vunpack.c.l.b16 %v108
    %v155 = vpack.c.b16 %v140, %v139
    %v156 = vpack.c.b16 %v142, %v141
    %v157 = vpack.c.b16 %v144, %v143
    %v158 = vpack.c.b16 %v146, %v145
    %v159 = vpack.c.b16 %v148, %v147
    %v160 = vpack.c.b16 %v150, %v149
    %v161 = vpack.c.b16 %v152, %v151
    %v162 = vpack.c.b16 %v154, %v153
    %171 = vmatpush.bf16.msra.mxu0 %v162
    %172 = vmatpush.bf16.msra.mxu0 %v161
    %173 = vmatpush.bf16.msra.mxu0 %v160
    %174 = vmatpush.bf16.msra.mxu0 %v159
    %175 = vmatpush.bf16.msra.mxu0 %v158
    %176 = vmatpush.bf16.msra.mxu0 %v157
    %177 = vmatpush.bf16.msra.mxu0 %v156
    %178 = vmatpush.bf16.msra.mxu0 %v155
    %179 = vmatmul.bf16.gmra.mxu0 %v119
    %v180 = vpop.f32.mrf.mxu0
    %v181 = vadd.f32 %v111, %v180
    %v182 = vpop.f32.mrf.mxu0
    %v183 = vadd.f32 %v111, %v182
    %184 = vmatmul.bf16.gmra.mxu0 %v120
    %v185 = vpop.f32.mrf.mxu0
    %v186 = vadd.f32 %v111, %v185
    %v187 = vpop.f32.mrf.mxu0
    %188 = vdwg.mxu0
    %v189 = vmax.f32 %v181, 0.0
    %v190 = vmax.f32 %v183, 0.0
    %v191 = vmax.f32 %v186, 0.0
    %v192 = vpack.c.bf16 %v190, %v189
    %v193 = vpack.c.bf16 %v191, %v191
    %v194 = vld [vmem:[#allocation7] sm:$0xf]
    %v195 = vld [vmem:[#allocation7 + $0x4] sm:$0xf]
    %v196 = vld [vmem:[#allocation7 + $0x8] sm:$0xf]
    %v197 = vld [vmem:[#allocation7 + $0xc] sm:$0xf]
    %v198 = vld [vmem:[#allocation7 + $0x10] sm:$0xf]
    %v199 = vld [vmem:[#allocation7 + $0x14] sm:$0xf]
    %v200 = vld [vmem:[#allocation7 + $0x18] sm:$0xf]
    %v201 = vld [vmem:[#allocation7 + $0x1c] sm:$0xf]
    %v202 = vld [vmem:[#allocation7 + $0x20] sm:$0xf]
    %v203 = vld [vmem:[#allocation7 + $0x24] sm:$0xf]
    %v204 = vld [vmem:[#allocation7 + $0x28] sm:$0xf]
    %v205 = vld [vmem:[#allocation7 + $0x2c] sm:$0xf]
    %v206 = vld [vmem:[#allocation7 + $0x30] sm:$0xf]
    %v207 = vld [vmem:[#allocation7 + $0x34] sm:$0xf]
    %v208 = vld [vmem:[#allocation7 + $0x38] sm:$0xf]
    %v209 = vld [vmem:[#allocation7 + $0x3c] sm:$0xf]
    %v210 = vld [vmem:[%s4] sm:$0x1]
    %v212 = vperm.slane %v210, 0
    %v230 = vunpack.c.l.b16 %v194
    %v231 = vunpack.c.l.b16 %v195
    %v232 = vunpack.c.l.b16 %v196
    %v233 = vunpack.c.l.b16 %v197
    %v234 = vunpack.c.l.b16 %v198
    %v235 = vunpack.c.l.b16 %v199
    %v236 = vunpack.c.l.b16 %v200
    %v237 = vunpack.c.l.b16 %v201
    %v238 = vunpack.c.l.b16 %v202
    %v239 = vunpack.c.l.b16 %v203
    %v240 = vunpack.c.l.b16 %v204
    %v241 = vunpack.c.l.b16 %v205
    %v242 = vunpack.c.l.b16 %v206
    %v243 = vunpack.c.l.b16 %v207
    %v244 = vunpack.c.l.b16 %v208
    %v245 = vunpack.c.l.b16 %v209
    %v246 = vpack.c.b16 %v231, %v230
    %v247 = vpack.c.b16 %v233, %v232
    %v248 = vpack.c.b16 %v235, %v234
    %v249 = vpack.c.b16 %v237, %v236
    %v250 = vpack.c.b16 %v239, %v238
    %v251 = vpack.c.b16 %v241, %v240
    %v252 = vpack.c.b16 %v243, %v242
    %v253 = vpack.c.b16 %v245, %v244
    %262 = vmatpush.bf16.msra.mxu0 %v253
    %263 = vmatpush.bf16.msra.mxu0 %v252
    %264 = vmatpush.bf16.msra.mxu0 %v251
    %265 = vmatpush.bf16.msra.mxu0 %v250
    %266 = vmatpush.bf16.msra.mxu0 %v249
    %267 = vmatpush.bf16.msra.mxu0 %v248
    %268 = vmatpush.bf16.msra.mxu0 %v247
    %269 = vmatpush.bf16.msra.mxu0 %v246
    %270 = vmatmul.bf16.gmra.mxu0 %v192
    %v271 = vpop.f32.mrf.mxu0
    %v272 = vadd.f32 %v212, %v271
    %v273 = vpop.f32.mrf.mxu0
    %v274 = vadd.f32 %v212, %v273
    %275 = vmatmul.bf16.gmra.mxu0 %v193
    %v276 = vpop.f32.mrf.mxu0
    %v277 = vadd.f32 %v212, %v276
    %v278 = vpop.f32.mrf.mxu0
    %279 = vdwg.mxu0
    %v280 = vmax.f32 %v272, 0.0
    %v281 = vmax.f32 %v274, 0.0
    %v282 = vmax.f32 %v277, 0.0
    %v283 = vpack.c.bf16 %v281, %v280
    %v284 = vpack.c.bf16 %v282, %v282
    %v285 = vld [vmem:[#allocation8] sm:$0xf]
    %v286 = vld [vmem:[#allocation8 + $0x4] sm:$0xf]
    %v287 = vld [vmem:[#allocation8 + $0x8] sm:$0xf]
    %v288 = vld [vmem:[#allocation8 + $0xc] sm:$0xf]
    %v289 = vld [vmem:[#allocation8 + $0x10] sm:$0xf]
    %v290 = vld [vmem:[#allocation8 + $0x14] sm:$0xf]
    %v291 = vld [vmem:[#allocation8 + $0x18] sm:$0xf]
    %v292 = vld [vmem:[#allocation8 + $0x1c] sm:$0xf]
    %v293 = vld [vmem:[#allocation8 + $0x20] sm:$0xf]
    %v294 = vld [vmem:[#allocation8 + $0x24] sm:$0xf]
    %v295 = vld [vmem:[#allocation8 + $0x28] sm:$0xf]
    %v296 = vld [vmem:[#allocation8 + $0x2c] sm:$0xf]
    %v297 = vld [vmem:[#allocation8 + $0x30] sm:$0xf]
    %v298 = vld [vmem:[#allocation8 + $0x34] sm:$0xf]
    %v299 = vld [vmem:[#allocation8 + $0x38] sm:$0xf]
    %v300 = vld [vmem:[#allocation8 + $0x3c] sm:$0xf]
    %v301 = vld [vmem:[%s6] sm:$0x1]
    %v303 = vperm.slane %v301, 0
    %v321 = vunpack.c.l.b16 %v285
    %v322 = vunpack.c.l.b16 %v286
    %v323 = vunpack.c.l.b16 %v287
    %v324 = vunpack.c.l.b16 %v288
    %v325 = vunpack.c.l.b16 %v289
    %v326 = vunpack.c.l.b16 %v290
    %v327 = vunpack.c.l.b16 %v291
    %v328 = vunpack.c.l.b16 %v292
    %v329 = vunpack.c.l.b16 %v293
    %v330 = vunpack.c.l.b16 %v294
    %v331 = vunpack.c.l.b16 %v295
    %v332 = vunpack.c.l.b16 %v296
    %v333 = vunpack.c.l.b16 %v297
    %v334 = vunpack.c.l.b16 %v298
    %v335 = vunpack.c.l.b16 %v299
    %v336 = vunpack.c.l.b16 %v300
    %v337 = vpack.c.b16 %v322, %v321
    %v338 = vpack.c.b16 %v324, %v323
    %v339 = vpack.c.b16 %v326, %v325
    %v340 = vpack.c.b16 %v328, %v327
    %v341 = vpack.c.b16 %v330, %v329
    %v342 = vpack.c.b16 %v332, %v331
    %v343 = vpack.c.b16 %v334, %v333
    %v344 = vpack.c.b16 %v336, %v335
    %353 = vmatpush.bf16.msra.mxu0 %v344
    %354 = vmatpush.bf16.msra.mxu0 %v343
    %355 = vmatpush.bf16.msra.mxu0 %v342
    %356 = vmatpush.bf16.msra.mxu0 %v341
    %357 = vmatpush.bf16.msra.mxu0 %v340
    %358 = vmatpush.bf16.msra.mxu0 %v339
    %359 = vmatpush.bf16.msra.mxu0 %v338
    %360 = vmatpush.bf16.msra.mxu0 %v337
    %361 = vmatmul.bf16.gmra.mxu0 %v283
    %v362 = vpop.f32.mrf.mxu0
    %v363 = vadd.f32 %v303, %v362
    %v364 = vpop.f32.mrf.mxu0
    %v365 = vadd.f32 %v303, %v364
    %366 = vmatmul.bf16.gmra.mxu0 %v284
    %v367 = vpop.f32.mrf.mxu0
    %v368 = vadd.f32 %v303, %v367
    %v369 = vpop.f32.mrf.mxu0
    %370 = vdwg.mxu0
    %371 = vst [vmem:[#allocation10] sm:$0xff] %v363
    %372 = vst [vmem:[#allocation10 + $0x8] sm:$0xff] %v365
    %373 = vst [vmem:[#allocation10 + $0x10] sm:$0xff] %v368
    // Predicated region
    $region46: #{tpu_custom_call.1} parent=1 // pred_check
      _
    $region47: #{tpu_custom_call.1} parent=1 // pred_check_branch
      %375 = sbr.rel (0) target = $region49
    $region48: #{tpu_custom_call.1} parent=1 // pred_region
      %377 = vsyncadd [#allocation4], 0
      %s378 = sshll.u32 [#allocation10], 4
      %s379 = int_to_ptr.vmem [resolvable:$true] %s378
      %s380 = sshll.u32 %s7, 4
      %s381 = int_to_ptr.hbm [resolvable:$true] %s380
      %386 = dma.vmem_to_hbm [thread:$0]  %s379, 384, %s381, [#allocation4], 128, 128, 8
    $region49: #{tpu_custom_call.1} parent=1 // pred_fallthru
      _
    // Predicated region
    $region50: #{tpu_custom_call.1} parent=1 // pred_check
      _
    $region51: #{tpu_custom_call.1} parent=1 // pred_check_branch
      %388 = sbr.rel (0) target = $region53
    $region52: #{tpu_custom_call.1} parent=1 // pred_region
      %390 = dma.done [#allocation4], 384
    $region53: #{tpu_custom_call.1} parent=1 // pred_fallthru
      _
    %391 = vsyncpa [#allocation3], 1
    %392 = vsyncpa [#allocation6], 1
    %393 = vsyncpa [#allocation9], 1
    %394 = vsyncpa [#allocation4], 1

</llo_original>
